<compile_context>
chip_gen: v5e
topology: v5e:2x2
jax: 0.10.0
libtpu: 0.0.40
codegen_flags: <defaults>
</compile_context>

<pallas_src>
import functools
import math

import numpy as np

import jax
import jax.numpy as jnp
from jax import lax
from jax.experimental import pallas as pl
from jax.experimental.pallas import tpu as pltpu


def _fused_kernel(x_ref, w_ref, f1_ref, f2_ref, g_ref, bt_ref, o_ref,
                  sum_ref, ssq_ref, *,
                  n_steps, imb, rpi, ho, kr, kh, ors, m_total, eps):
    """grid = (n_steps + 1,): steps [0, n_steps) = conv + stats, step n_steps = BN+ReLU."""
    s = pl.program_id(0)

    @pl.when(s == 0)
    def _init():
        sum_ref[...] = jnp.zeros_like(sum_ref)
        ssq_ref[...] = jnp.zeros_like(ssq_ref)

    @pl.when(s < n_steps)
    def _conv_and_stats():
        base = s * ors
        for j in range(imb):                                   # static unroll (imb <= 16)
            # one aligned (even-row) load of the padded image slab, upcast once to f32
            x_img = x_ref[pl.ds(j * rpi, rpi), :].astype(jnp.float32)
            acc = jnp.zeros((ho, o_ref.shape[1]), jnp.float32)
            for dh in range(kh):                               # kh row-shifted banded matmuls
                xs = x_img[dh:dh + ho, :]                      # (ho, kr) static value slice
                wk = w_ref[pl.ds(dh * kr, kr), :]              # (kr, CL_pad)
                acc = acc + jnp.dot(xs, wk, preferred_element_type=jnp.float32)
            row0 = base + j * ho
            if (ho % 8 == 0) and (ors % 8 == 0):
                row0 = pl.multiple_of(row0, 8)
            o_ref[pl.ds(row0, ho), :] = acc                    # lane-dense, stays in VMEM
            sum_ref[...] += jnp.sum(acc, axis=0, keepdims=True)
            ssq_ref[...] += jnp.sum(acc * acc, axis=0, keepdims=True)

    @pl.when(s == n_steps)
    def _bn_relu_finalize():
        inv_m = jnp.float32(1.0 / m_total)
        # fold the per-lane partials down to per-channel totals (lane l -> channel l % Cout)
        tot = jnp.dot(sum_ref[...], f1_ref[...], preferred_element_type=jnp.float32)
        tot2 = jnp.dot(ssq_ref[...], f1_ref[...], preferred_element_type=jnp.float32)
        mean_c = tot * inv_m
        var_c = jnp.maximum(tot2 * inv_m - mean_c * mean_c, 0.0)
        # TODO(synk): E[y^2]-E[y]^2 loses precision for huge activation magnitudes;
        # switch to a centered second pass over the resident buffer if that matters.
        istd_c = lax.rsqrt(var_c + jnp.float32(eps))
        # broadcast per-channel values back across the W*Cout lanes
        mean = jnp.dot(mean_c, f2_ref[...], preferred_element_type=jnp.float32)
        istd = jnp.dot(istd_c, f2_ref[...], preferred_element_type=jnp.float32)
        scale = g_ref[...] * istd
        shift = bt_ref[...] - mean * scale

        def _apply(r0):
            blk = o_ref[pl.ds(r0, ors), :]
            o_ref[pl.ds(r0, ors), :] = jnp.maximum(blk * scale + shift, 0.0)

        if n_steps <= 16:
            for i in range(n_steps):                           # static sweep of resident y
                _apply(i * ors)
        else:
            def body(i, c):
                _apply(i * ors)
                return c
            lax.fori_loop(0, n_steps, body, 0)


@functools.partial(jax.jit, static_argnames=("eps",))
def single_conv_forward(x_nchw, w, b, gamma, beta, *, eps=1e-5):
    # Conv bias is exactly cancelled by training-mode BatchNorm (batch mean absorbs it).
    del b

    N, Cin, H, W = x_nchw.shape
    Cout, wc_in, kh, kw = w.shape
    assert wc_in == Cin and Cout <= 128
    pad = 0 if kh == 1 else 1
    Ho = H + 2 * pad - kh + 1
    Wo = W + 2 * pad - kw + 1

    rpi = H + 2 * pad
    rpi += rpi % 2                                  # even rows/img -> packed-aligned bf16 slab loads
    KR = (W + 2 * pad) * Cin
    CL = Wo * Cout
    CL_pad = max(128, -(-CL // 128) * 128)          # lane-dense (zero-padded) output width

    # ---- images per conv grid step (zero-pad N; padded images contribute 0 to stats) ----
    if N <= 8:
        imb, n_pad = N, N                           # single full-extent conv step
    else:
        align = 16 // math.gcd(rpi, 16)             # imb*rpi multiple of 16 (bf16 sublane tile)
        imb = align
        per_img_bytes = rpi * KR * 2
        while imb * 2 <= 16 and imb * 2 * per_img_bytes <= (2 << 20):
            imb *= 2
        n_pad = -(-N // imb) * imb
    n_steps = n_pad // imb
    ors = imb * Ho                                  # output rows written per conv step
    m_total = N * Ho * Wo                           # real (unpadded) pixel count for BN stats

    # ---- activations: NHWC, padded, bf16, flattened to a 2-D row slab (read ~once) ----
    # TODO(synk): if the surrounding model is NHWC, drop this transpose (pure layout traffic).
    x = jnp.transpose(x_nchw, (0, 2, 3, 1)).astype(jnp.bfloat16)
    x_pad = jnp.pad(x, ((0, n_pad - N), (pad, rpi - H - pad), (pad, pad), (0, 0)))
    x_rows = x_pad.reshape(n_pad * rpi, KR)

    # ---- banded weights: out_rows = sum_dh x_row_slab[dh:dh+Ho] @ B[dh] ----
    # B[dh, wcol*Cin+ci, wo*Cout+co] = w[co, ci, dh, wcol-wo] for 0 <= wcol-wo < kw.
    wgt = jnp.transpose(w, (2, 3, 1, 0)).astype(jnp.float32)     # (kh, kw, Cin, Cout)
    r = np.arange(KR)
    wo_i = np.arange(Wo)
    dw = r[:, None] // Cin - wo_i[None, :]                        # (KR, Wo) static
    valid = (dw >= 0) & (dw < kw)
    dw_c = np.clip(dw, 0, kw - 1)
    ci = (r % Cin)[:, None]                                       # (KR, 1) static
    bmat = wgt[:, dw_c, ci, :] * valid[None, :, :, None]          # (kh, KR, Wo, Cout)
    bmat = bmat.reshape(kh, KR, CL)
    bmat = jnp.pad(bmat, ((0, 0), (0, 0), (0, CL_pad - CL)))
    bmat = bmat.reshape(kh * KR, CL_pad)                          # small; kept f32 for precision

    # ---- per-channel fold / broadcast matrices + BN affine rows (precomputed) ----
    lane_np = np.arange(CL_pad)
    chan_np = np.arange(128)
    f1 = jnp.asarray(((lane_np[:, None] % Cout) == chan_np[None, :])
                     & (lane_np[:, None] < CL), jnp.float32)      # (CL_pad, 128)
    f2 = jnp.asarray(chan_np[:, None] == (lane_np[None, :] % Cout),
                     jnp.float32)                                 # (128, CL_pad)
    lane_ch = jnp.asarray(lane_np % Cout)
    g_row = gamma.astype(jnp.float32)[lane_ch][None, :]           # (1, CL_pad)
    bt_row = beta.astype(jnp.float32)[lane_ch][None, :]

    # ---- VMEM budget (computed from the real buffers, not a hard-coded limit) ----
    def _buf(shape, itemsize):
        rr, cc = shape
        return (-(-rr // 8) * 8) * (-(-cc // 128) * 128) * itemsize
    out_rows = n_pad * Ho
    vmem_bytes = (2 * _buf((imb * rpi, KR), 2)        # double-buffered bf16 input blocks
                  + 2 * _buf((out_rows, CL_pad), 4)   # resident output (assume 2 buffers)
                  + 2 * _buf((kh * KR, CL_pad), 4)    # banded weights
                  + 2 * _buf((CL_pad, 128), 4)        # F1
                  + 2 * _buf((128, CL_pad), 4)        # F2
                  + 4 * _buf((1, CL_pad), 4)          # gamma/beta rows
                  + 2 * _buf((1, CL_pad), 4))         # sum/ssq scratch
    vmem_limit = min(int(vmem_bytes * 1.25) + (8 << 20), 96 * 1024 * 1024)
    # TODO(synk): on v7x (64 MiB VMEM/TC) drop the resident output to bf16 / stream it
    # when vmem_bytes approaches the physical budget.

    kernel = functools.partial(
        _fused_kernel, n_steps=n_steps, imb=imb, rpi=rpi, ho=Ho, kr=KR,
        kh=kh, ors=ors, m_total=float(m_total), eps=float(eps))

    out_full = pl.pallas_call(
        kernel,
        out_shape=jax.ShapeDtypeStruct((out_rows, CL_pad), jnp.float32),
        grid_spec=pltpu.PrefetchScalarGridSpec(
            num_scalar_prefetch=0,
            grid=(n_steps + 1,),
            in_specs=[
                # activations: walk image blocks, park on the last one for the tail step
                pl.BlockSpec((imb * rpi, KR),
                             lambda s: (jnp.minimum(s, n_steps - 1), 0)),
                pl.BlockSpec((kh * KR, CL_pad), lambda s: (0, 0)),   # banded weights
                pl.BlockSpec((CL_pad, 128), lambda s: (0, 0)),       # F1 fold
                pl.BlockSpec((128, CL_pad), lambda s: (0, 0)),       # F2 broadcast
                pl.BlockSpec((1, CL_pad), lambda s: (0, 0)),         # gamma row
                pl.BlockSpec((1, CL_pad), lambda s: (0, 0)),         # beta row
            ],
            # full-extent, constant-index output: VMEM-resident, written to HBM once
            out_specs=pl.BlockSpec((out_rows, CL_pad), lambda s: (0, 0)),
            scratch_shapes=[pltpu.VMEM((1, CL_pad), jnp.float32),    # per-lane sum
                            pltpu.VMEM((1, CL_pad), jnp.float32)]),  # per-lane sum^2
        compiler_params=pltpu.CompilerParams(
            dimension_semantics=("arbitrary",),
            vmem_limit_bytes=vmem_limit),
    )(x_rows, bmat, f1, f2, g_row, bt_row)

    out = out_full[:N * Ho, :CL].reshape(N, Ho, Wo, Cout)
    return jnp.transpose(out, (0, 3, 1, 2))                         # back to NCHW


def _reference(x_nchw, w, b, gamma, beta, eps=1e-5):
    """Pure-JAX reference (lax.conv + training-mode BN + ReLU) for sanity check."""
    y = lax.conv_general_dilated(
        x_nchw.astype(jnp.float32), w.astype(jnp.float32),
        window_strides=(1, 1), padding=((1, 1), (1, 1)),
        dimension_numbers=("NCHW", "OIHW", "NCHW"),
        precision=lax.Precision.HIGHEST)
    y = y + b.reshape(1, -1, 1, 1)
    mean = jnp.mean(y, axis=(0, 2, 3), keepdims=True)
    var = jnp.mean((y - mean) ** 2, axis=(0, 2, 3), keepdims=True)
    yhat = (y - mean) / jnp.sqrt(var + eps)
    yhat = yhat * gamma.reshape(1, -1, 1, 1) + beta.reshape(1, -1, 1, 1)
    return jnp.maximum(yhat, 0.0)


if __name__ == "__main__":
    # SingleConv(in_channels=4, out_channels=8, kernel_size=3)
    N, Cin, H, W = 2, 4, 16, 16
    Cout, k = 8, 3

    key = jax.random.PRNGKey(0)
    kx, kw_, kb, kg, kbt = jax.random.split(key, 5)
    x = jax.random.normal(kx, (N, Cin, H, W), jnp.float32)
    w = jax.random.normal(kw_, (Cout, Cin, k, k), jnp.float32) * 0.2   # conv weight
    b = jax.random.normal(kb, (Cout,), jnp.float32) * 0.1              # conv bias
    gamma = 1.0 + 0.1 * jax.random.normal(kg, (Cout,), jnp.float32)    # BN weight
    beta = 0.1 * jax.random.normal(kbt, (Cout,), jnp.float32)          # BN bias

    out = single_conv_forward(x, w, b, gamma, beta)
    out = jax.block_until_ready(out)

    ref = _reference(x, w, b, gamma, beta)
    assert out.shape == (N, Cout, H, W)
    err = float(jnp.max(jnp.abs(out - ref)))
    assert err < 1e-2, f"mismatch vs pure-JAX reference: {err}"

    print("KERNEL_OK")
</pallas_src>

<mosaic_0001>
module attributes {stable_mosaic.version = 11 : i64} {
  func.func @_fused_kernel(%arg0: i32, %arg1: memref<36x72xbf16, #tpu.memory_space<vmem>>, %arg2: memref<216x128xf32, #tpu.memory_space<vmem>>, %arg3: memref<128x128xf32, #tpu.memory_space<vmem>>, %arg4: memref<128x128xf32, #tpu.memory_space<vmem>>, %arg5: memref<1x128xf32, #tpu.memory_space<vmem>>, %arg6: memref<1x128xf32, #tpu.memory_space<vmem>>, %arg7: memref<32x128xf32, #tpu.memory_space<vmem>>, %arg8: memref<1x128xf32, #tpu.memory_space<vmem>>, %arg9: memref<1x128xf32, #tpu.memory_space<vmem>>) attributes {dimension_semantics = [#tpu.dimension_semantics<arbitrary>], iteration_bounds = array<i64: 2>, scalar_prefetch = 0 : i64, scratch_operands = 2 : i64, tpu.core_type = #tpu.core_type<tc>, window_params = [{transform_indices = @transform_0, window_bounds = array<i64: 36, 72>}, {pipeline_mode = #tpu.pipeline_mode<synchronous>, transform_indices = @transform_1, window_bounds = array<i64: 216, 128>}, {pipeline_mode = #tpu.pipeline_mode<synchronous>, transform_indices = @transform_2, window_bounds = array<i64: 128, 128>}, {pipeline_mode = #tpu.pipeline_mode<synchronous>, transform_indices = @transform_3, window_bounds = array<i64: 128, 128>}, {pipeline_mode = #tpu.pipeline_mode<synchronous>, transform_indices = @transform_4, window_bounds = array<i64: 1, 128>}, {pipeline_mode = #tpu.pipeline_mode<synchronous>, transform_indices = @transform_5, window_bounds = array<i64: 1, 128>}, {pipeline_mode = #tpu.pipeline_mode<synchronous>, transform_indices = @transform_6, window_bounds = array<i64: 32, 128>}]} {
    %c0_i32 = arith.constant 0 : i32
    %0 = arith.cmpi eq, %arg0, %c0_i32 : i32
    %1 = arith.extui %0 : i1 to i32
    %c0_i32_0 = arith.constant 0 : i32
    %2 = arith.cmpi ne, %1, %c0_i32_0 : i32
    scf.if %2 {
      %cst = arith.constant 0.000000e+00 : f32
      %9 = vector.broadcast %cst : f32 to vector<1x128xf32>
      %c0 = arith.constant 0 : index
      %c0_4 = arith.constant 0 : index
      %10 = vector.load %arg8[%c0, %c0_4] : memref<1x128xf32, #tpu.memory_space<vmem>>, vector<1x128xf32>
      tpu.vector_store %arg8[%c0, %c0_4], %9 {strides = array<i32>} : memref<1x128xf32, #tpu.memory_space<vmem>>, vector<1x128xf32>,
      %cst_5 = arith.constant 0.000000e+00 : f32
      %11 = vector.broadcast %cst_5 : f32 to vector<1x128xf32>
      %c0_6 = arith.constant 0 : index
      %c0_7 = arith.constant 0 : index
      %12 = vector.load %arg9[%c0_6, %c0_7] : memref<1x128xf32, #tpu.memory_space<vmem>>, vector<1x128xf32>
      tpu.vector_store %arg9[%c0_6, %c0_7], %11 {strides = array<i32>} : memref<1x128xf32, #tpu.memory_space<vmem>>, vector<1x128xf32>,
    } else {
    }
    %c1_i32 = arith.constant 1 : i32
    %3 = arith.cmpi slt, %arg0, %c1_i32 : i32
    %4 = arith.extui %3 : i1 to i32
    %c0_i32_1 = arith.constant 0 : i32
    %5 = arith.cmpi ne, %4, %c0_i32_1 : i32
    scf.if %5 {
      %c32_i32 = arith.constant 32 : i32
      %9 = arith.muli %arg0, %c32_i32 : i32
      %c0 = arith.constant 0 : index
      %c0_4 = arith.constant 0 : index
      %10 = vector.load %arg1[%c0, %c0_4] : memref<36x72xbf16, #tpu.memory_space<vmem>>, vector<18x72xbf16>
      %11 = arith.extf %10 : vector<18x72xbf16> to vector<18x72xf32>
      %cst = arith.constant 0.000000e+00 : f32
      %12 = vector.broadcast %cst : f32 to vector<16x128xf32>
      %13 = vector.extract_strided_slice %11 {offsets = [0, 0], sizes = [16, 72], strides = [1, 1]} : vector<18x72xf32> to vector<16x72xf32>
      %c0_5 = arith.constant 0 : index
      %c0_6 = arith.constant 0 : index
      %14 = vector.load %arg2[%c0_5, %c0_6] : memref<216x128xf32, #tpu.memory_space<vmem>>, vector<72x128xf32>
      %cst_7 = arith.constant dense<0.000000e+00> : vector<16x128xf32>
      %15 = tpu.matmul %13, %14, %cst_7 {dimension_numbers = #tpu.dot_dimension_numbers<[1], [0], [0], [1], [0, 0, 1, 1], [], []>} : vector<16x72xf32>, vector<72x128xf32>, vector<16x128xf32> -> vector<16x128xf32>
      %16 = arith.addf %12, %15 : vector<16x128xf32>
      %17 = vector.extract_strided_slice %11 {offsets = [1, 0], sizes = [16, 72], strides = [1, 1]} : vector<18x72xf32> to vector<16x72xf32>
      %c72 = arith.constant 72 : index
      %c0_8 = arith.constant 0 : index
      %18 = vector.load %arg2[%c72, %c0_8] : memref<216x128xf32, #tpu.memory_space<vmem>>, vector<72x128xf32>
      %cst_9 = arith.constant dense<0.000000e+00> : vector<16x128xf32>
      %19 = tpu.matmul %17, %18, %cst_9 {dimension_numbers = #tpu.dot_dimension_numbers<[1], [0], [0], [1], [0, 0, 1, 1], [], []>} : vector<16x72xf32>, vector<72x128xf32>, vector<16x128xf32> -> vector<16x128xf32>
      %20 = arith.addf %16, %19 : vector<16x128xf32>
      %21 = vector.extract_strided_slice %11 {offsets = [2, 0], sizes = [16, 72], strides = [1, 1]} : vector<18x72xf32> to vector<16x72xf32>
      %c144 = arith.constant 144 : index
      %c0_10 = arith.constant 0 : index
      %22 = vector.load %arg2[%c144, %c0_10] : memref<216x128xf32, #tpu.memory_space<vmem>>, vector<72x128xf32>
      %cst_11 = arith.constant dense<0.000000e+00> : vector<16x128xf32>
      %23 = tpu.matmul %21, %22, %cst_11 {dimension_numbers = #tpu.dot_dimension_numbers<[1], [0], [0], [1], [0, 0, 1, 1], [], []>} : vector<16x72xf32>, vector<72x128xf32>, vector<16x128xf32> -> vector<16x128xf32>
      %24 = arith.addf %20, %23 : vector<16x128xf32>
      %c0_i32_12 = arith.constant 0 : i32
      %25 = arith.addi %9, %c0_i32_12 : i32
      %26 = tpu.assume_multiple %25, 8 : i32
      %27 = arith.index_cast %26 : i32 to index
      %c0_13 = arith.constant 0 : index
      %28 = vector.load %arg7[%27, %c0_13] : memref<32x128xf32, #tpu.memory_space<vmem>>, vector<16x128xf32>
      tpu.vector_store %arg7[%27, %c0_13], %24 {strides = array<i32>} : memref<32x128xf32, #tpu.memory_space<vmem>>, vector<16x128xf32>,
      %c0_14 = arith.constant 0 : index
      %c0_15 = arith.constant 0 : index
      %29 = vector.load %arg8[%c0_14, %c0_15] : memref<1x128xf32, #tpu.memory_space<vmem>>, vector<1x128xf32>
      %cst_16 = arith.constant dense<0.000000e+00> : vector<128xf32>
      %30 = vector.multi_reduction <add>, %24, %cst_16 [0] : vector<16x128xf32> to vector<128xf32>
      %31 = vector.shape_cast %30 : vector<128xf32> to vector<1x128xf32>
      %32 = arith.addf %29, %31 : vector<1x128xf32>
      %c0_17 = arith.constant 0 : index
      %c0_18 = arith.constant 0 : index
      %33 = vector.load %arg8[%c0_17, %c0_18] : memref<1x128xf32, #tpu.memory_space<vmem>>, vector<1x128xf32>
      tpu.vector_store %arg8[%c0_17, %c0_18], %32 {strides = array<i32>} : memref<1x128xf32, #tpu.memory_space<vmem>>, vector<1x128xf32>,
      %c0_19 = arith.constant 0 : index
      %c0_20 = arith.constant 0 : index
      %34 = vector.load %arg9[%c0_19, %c0_20] : memref<1x128xf32, #tpu.memory_space<vmem>>, vector<1x128xf32>
      %35 = arith.mulf %24, %24 : vector<16x128xf32>
      %cst_21 = arith.constant dense<0.000000e+00> : vector<128xf32>
      %36 = vector.multi_reduction <add>, %35, %cst_21 [0] : vector<16x128xf32> to vector<128xf32>
      %37 = vector.shape_cast %36 : vector<128xf32> to vector<1x128xf32>
      %38 = arith.addf %34, %37 : vector<1x128xf32>
      %c0_22 = arith.constant 0 : index
      %c0_23 = arith.constant 0 : index
      %39 = vector.load %arg9[%c0_22, %c0_23] : memref<1x128xf32, #tpu.memory_space<vmem>>, vector<1x128xf32>
      tpu.vector_store %arg9[%c0_22, %c0_23], %38 {strides = array<i32>} : memref<1x128xf32, #tpu.memory_space<vmem>>, vector<1x128xf32>,
      %c18 = arith.constant 18 : index
      %c0_24 = arith.constant 0 : index
      %40 = vector.load %arg1[%c18, %c0_24] : memref<36x72xbf16, #tpu.memory_space<vmem>>, vector<18x72xbf16>
      %41 = arith.extf %40 : vector<18x72xbf16> to vector<18x72xf32>
      %cst_25 = arith.constant 0.000000e+00 : f32
      %42 = vector.broadcast %cst_25 : f32 to vector<16x128xf32>
      %43 = vector.extract_strided_slice %41 {offsets = [0, 0], sizes = [16, 72], strides = [1, 1]} : vector<18x72xf32> to vector<16x72xf32>
      %c0_26 = arith.constant 0 : index
      %c0_27 = arith.constant 0 : index
      %44 = vector.load %arg2[%c0_26, %c0_27] : memref<216x128xf32, #tpu.memory_space<vmem>>, vector<72x128xf32>
      %cst_28 = arith.constant dense<0.000000e+00> : vector<16x128xf32>
      %45 = tpu.matmul %43, %44, %cst_28 {dimension_numbers = #tpu.dot_dimension_numbers<[1], [0], [0], [1], [0, 0, 1, 1], [], []>} : vector<16x72xf32>, vector<72x128xf32>, vector<16x128xf32> -> vector<16x128xf32>
      %46 = arith.addf %42, %45 : vector<16x128xf32>
      %47 = vector.extract_strided_slice %41 {offsets = [1, 0], sizes = [16, 72], strides = [1, 1]} : vector<18x72xf32> to vector<16x72xf32>
      %c72_29 = arith.constant 72 : index
      %c0_30 = arith.constant 0 : index
      %48 = vector.load %arg2[%c72_29, %c0_30] : memref<216x128xf32, #tpu.memory_space<vmem>>, vector<72x128xf32>
      %cst_31 = arith.constant dense<0.000000e+00> : vector<16x128xf32>
      %49 = tpu.matmul %47, %48, %cst_31 {dimension_numbers = #tpu.dot_dimension_numbers<[1], [0], [0], [1], [0, 0, 1, 1], [], []>} : vector<16x72xf32>, vector<72x128xf32>, vector<16x128xf32> -> vector<16x128xf32>
      %50 = arith.addf %46, %49 : vector<16x128xf32>
      %51 = vector.extract_strided_slice %41 {offsets = [2, 0], sizes = [16, 72], strides = [1, 1]} : vector<18x72xf32> to vector<16x72xf32>
      %c144_32 = arith.constant 144 : index
      %c0_33 = arith.constant 0 : index
      %52 = vector.load %arg2[%c144_32, %c0_33] : memref<216x128xf32, #tpu.memory_space<vmem>>, vector<72x128xf32>
      %cst_34 = arith.constant dense<0.000000e+00> : vector<16x128xf32>
      %53 = tpu.matmul %51, %52, %cst_34 {dimension_numbers = #tpu.dot_dimension_numbers<[1], [0], [0], [1], [0, 0, 1, 1], [], []>} : vector<16x72xf32>, vector<72x128xf32>, vector<16x128xf32> -> vector<16x128xf32>
      %54 = arith.addf %50, %53 : vector<16x128xf32>
      %c16_i32 = arith.constant 16 : i32
      %55 = arith.addi %9, %c16_i32 : i32
      %56 = tpu.assume_multiple %55, 8 : i32
      %57 = arith.index_cast %56 : i32 to index
      %c0_35 = arith.constant 0 : index
      %58 = vector.load %arg7[%57, %c0_35] : memref<32x128xf32, #tpu.memory_space<vmem>>, vector<16x128xf32>
      tpu.vector_store %arg7[%57, %c0_35], %54 {strides = array<i32>} : memref<32x128xf32, #tpu.memory_space<vmem>>, vector<16x128xf32>,
      %c0_36 = arith.constant 0 : index
      %c0_37 = arith.constant 0 : index
      %59 = vector.load %arg8[%c0_36, %c0_37] : memref<1x128xf32, #tpu.memory_space<vmem>>, vector<1x128xf32>
      %cst_38 = arith.constant dense<0.000000e+00> : vector<128xf32>
      %60 = vector.multi_reduction <add>, %54, %cst_38 [0] : vector<16x128xf32> to vector<128xf32>
      %61 = vector.shape_cast %60 : vector<128xf32> to vector<1x128xf32>
      %62 = arith.addf %59, %61 : vector<1x128xf32>
      %c0_39 = arith.constant 0 : index
      %c0_40 = arith.constant 0 : index
      %63 = vector.load %arg8[%c0_39, %c0_40] : memref<1x128xf32, #tpu.memory_space<vmem>>, vector<1x128xf32>
      tpu.vector_store %arg8[%c0_39, %c0_40], %62 {strides = array<i32>} : memref<1x128xf32, #tpu.memory_space<vmem>>, vector<1x128xf32>,
      %c0_41 = arith.constant 0 : index
      %c0_42 = arith.constant 0 : index
      %64 = vector.load %arg9[%c0_41, %c0_42] : memref<1x128xf32, #tpu.memory_space<vmem>>, vector<1x128xf32>
      %65 = arith.mulf %54, %54 : vector<16x128xf32>
      %cst_43 = arith.constant dense<0.000000e+00> : vector<128xf32>
      %66 = vector.multi_reduction <add>, %65, %cst_43 [0] : vector<16x128xf32> to vector<128xf32>
      %67 = vector.shape_cast %66 : vector<128xf32> to vector<1x128xf32>
      %68 = arith.addf %64, %67 : vector<1x128xf32>
      %c0_44 = arith.constant 0 : index
      %c0_45 = arith.constant 0 : index
      %69 = vector.load %arg9[%c0_44, %c0_45] : memref<1x128xf32, #tpu.memory_space<vmem>>, vector<1x128xf32>
      tpu.vector_store %arg9[%c0_44, %c0_45], %68 {strides = array<i32>} : memref<1x128xf32, #tpu.memory_space<vmem>>, vector<1x128xf32>,
    } else {
    }
    %c1_i32_2 = arith.constant 1 : i32
    %6 = arith.cmpi eq, %arg0, %c1_i32_2 : i32
    %7 = arith.extui %6 : i1 to i32
    %c0_i32_3 = arith.constant 0 : i32
    %8 = arith.cmpi ne, %7, %c0_i32_3 : i32
    scf.if %8 {
      %c0 = arith.constant 0 : index
      %c0_4 = arith.constant 0 : index
      %9 = vector.load %arg8[%c0, %c0_4] : memref<1x128xf32, #tpu.memory_space<vmem>>, vector<1x128xf32>
      %c0_5 = arith.constant 0 : index
      %c0_6 = arith.constant 0 : index
      %10 = vector.load %arg3[%c0_5, %c0_6] : memref<128x128xf32, #tpu.memory_space<vmem>>, vector<128x128xf32>
      %cst = arith.constant dense<0.000000e+00> : vector<1x128xf32>
      %11 = tpu.matmul %9, %10, %cst {dimension_numbers = #tpu.dot_dimension_numbers<[1], [0], [0], [1], [0, 0, 1, 1], [], []>} : vector<1x128xf32>, vector<128x128xf32>, vector<1x128xf32> -> vector<1x128xf32>
      %c0_7 = arith.constant 0 : index
      %c0_8 = arith.constant 0 : index
      %12 = vector.load %arg9[%c0_7, %c0_8] : memref<1x128xf32, #tpu.memory_space<vmem>>, vector<1x128xf32>
      %c0_9 = arith.constant 0 : index
      %c0_10 = arith.constant 0 : index
      %13 = vector.load %arg3[%c0_9, %c0_10] : memref<128x128xf32, #tpu.memory_space<vmem>>, vector<128x128xf32>
      %cst_11 = arith.constant dense<0.000000e+00> : vector<1x128xf32>
      %14 = tpu.matmul %12, %13, %cst_11 {dimension_numbers = #tpu.dot_dimension_numbers<[1], [0], [0], [1], [0, 0, 1, 1], [], []>} : vector<1x128xf32>, vector<128x128xf32>, vector<1x128xf32> -> vector<1x128xf32>
      %cst_12 = arith.constant 0.001953125 : f32
      %15 = vector.broadcast %cst_12 : f32 to vector<1x128xf32>
      %16 = arith.mulf %11, %15 : vector<1x128xf32>
      %cst_13 = arith.constant 0.001953125 : f32
      %17 = vector.broadcast %cst_13 : f32 to vector<1x128xf32>
      %18 = arith.mulf %14, %17 : vector<1x128xf32>
      %19 = arith.mulf %16, %16 : vector<1x128xf32>
      %20 = arith.subf %18, %19 : vector<1x128xf32>
      %cst_14 = arith.constant 0.000000e+00 : f32
      %21 = vector.broadcast %cst_14 : f32 to vector<1x128xf32>
      %22 = arith.maximumf %20, %21 : vector<1x128xf32>
      %cst_15 = arith.constant 9.99999974E-6 : f32
      %23 = vector.broadcast %cst_15 : f32 to vector<1x128xf32>
      %24 = arith.addf %22, %23 : vector<1x128xf32>
      %25 = math.rsqrt %24 : vector<1x128xf32>
      %c0_16 = arith.constant 0 : index
      %c0_17 = arith.constant 0 : index
      %26 = vector.load %arg4[%c0_16, %c0_17] : memref<128x128xf32, #tpu.memory_space<vmem>>, vector<128x128xf32>
      %cst_18 = arith.constant dense<0.000000e+00> : vector<1x128xf32>
      %27 = tpu.matmul %16, %26, %cst_18 {dimension_numbers = #tpu.dot_dimension_numbers<[1], [0], [0], [1], [0, 0, 1, 1], [], []>} : vector<1x128xf32>, vector<128x128xf32>, vector<1x128xf32> -> vector<1x128xf32>
      %c0_19 = arith.constant 0 : index
      %c0_20 = arith.constant 0 : index
      %28 = vector.load %arg4[%c0_19, %c0_20] : memref<128x128xf32, #tpu.memory_space<vmem>>, vector<128x128xf32>
      %cst_21 = arith.constant dense<0.000000e+00> : vector<1x128xf32>
      %29 = tpu.matmul %25, %28, %cst_21 {dimension_numbers = #tpu.dot_dimension_numbers<[1], [0], [0], [1], [0, 0, 1, 1], [], []>} : vector<1x128xf32>, vector<128x128xf32>, vector<1x128xf32> -> vector<1x128xf32>
      %c0_22 = arith.constant 0 : index
      %c0_23 = arith.constant 0 : index
      %30 = vector.load %arg5[%c0_22, %c0_23] : memref<1x128xf32, #tpu.memory_space<vmem>>, vector<1x128xf32>
      %31 = arith.mulf %30, %29 : vector<1x128xf32>
      %c0_24 = arith.constant 0 : index
      %c0_25 = arith.constant 0 : index
      %32 = vector.load %arg6[%c0_24, %c0_25] : memref<1x128xf32, #tpu.memory_space<vmem>>, vector<1x128xf32>
      %33 = arith.mulf %27, %31 : vector<1x128xf32>
      %34 = arith.subf %32, %33 : vector<1x128xf32>
      %c0_26 = arith.constant 0 : index
      %c0_27 = arith.constant 0 : index
      %35 = vector.load %arg7[%c0_26, %c0_27] : memref<32x128xf32, #tpu.memory_space<vmem>>, vector<32x128xf32>
      %36 = vector.broadcast %31 : vector<1x128xf32> to vector<32x128xf32>
      %37 = arith.mulf %35, %36 : vector<32x128xf32>
      %38 = vector.broadcast %34 : vector<1x128xf32> to vector<32x128xf32>
      %39 = arith.addf %37, %38 : vector<32x128xf32>
      %cst_28 = arith.constant 0.000000e+00 : f32
      %40 = vector.broadcast %cst_28 : f32 to vector<32x128xf32>
      %41 = arith.maximumf %39, %40 : vector<32x128xf32>
      %c0_29 = arith.constant 0 : index
      %c0_30 = arith.constant 0 : index
      %42 = vector.load %arg7[%c0_29, %c0_30] : memref<32x128xf32, #tpu.memory_space<vmem>>, vector<32x128xf32>
      tpu.vector_store %arg7[%c0_29, %c0_30], %41 {strides = array<i32>} : memref<32x128xf32, #tpu.memory_space<vmem>>, vector<32x128xf32>,
    } else {
    }
    return
  }
  func.func @transform_0(%arg0: i32) -> (i32, i32) {
    %c0_i32 = arith.constant 0 : i32
    %0 = arith.minsi %arg0, %c0_i32 : i32
    %c0_i32_0 = arith.constant 0 : i32
    %c0_i32_1 = arith.constant 0 : i32
    return %0, %c0_i32_0 : i32, i32
  }
  func.func @transform_1(%arg0: i32) -> (i32, i32) {
    %c0_i32 = arith.constant 0 : i32
    %c0_i32_0 = arith.constant 0 : i32
    %c0_i32_1 = arith.constant 0 : i32
    return %c0_i32, %c0_i32_0 : i32, i32
  }
  func.func @transform_2(%arg0: i32) -> (i32, i32) {
    %c0_i32 = arith.constant 0 : i32
    %c0_i32_0 = arith.constant 0 : i32
    %c0_i32_1 = arith.constant 0 : i32
    return %c0_i32, %c0_i32_0 : i32, i32
  }
  func.func @transform_3(%arg0: i32) -> (i32, i32) {
    %c0_i32 = arith.constant 0 : i32
    %c0_i32_0 = arith.constant 0 : i32
    %c0_i32_1 = arith.constant 0 : i32
    return %c0_i32, %c0_i32_0 : i32, i32
  }
  func.func @transform_4(%arg0: i32) -> (i32, i32) {
    %c0_i32 = arith.constant 0 : i32
    %c0_i32_0 = arith.constant 0 : i32
    %c0_i32_1 = arith.constant 0 : i32
    return %c0_i32, %c0_i32_0 : i32, i32
  }
  func.func @transform_5(%arg0: i32) -> (i32, i32) {
    %c0_i32 = arith.constant 0 : i32
    %c0_i32_0 = arith.constant 0 : i32
    %c0_i32_1 = arith.constant 0 : i32
    return %c0_i32, %c0_i32_0 : i32, i32
  }
  func.func @transform_6(%arg0: i32) -> (i32, i32) {
    %c0_i32 = arith.constant 0 : i32
    %c0_i32_0 = arith.constant 0 : i32
    %c0_i32_1 = arith.constant 0 : i32
    return %c0_i32, %c0_i32_0 : i32, i32
  }
}

</mosaic_0001>

<llo_original>
// kernel: single_conv_forward.1
$region0: #{single_conv_forward.1}
  #allocation0 [shape = 'u32[]', space=smem, size = 0x4, offset = 0x4, fixed_abs, tag = 'smem constant byte address 0x4 - core index']
  #allocation1 [shape = 'u32[72,128]{1,0:T(1,128)}', space=vmem, size = 0x9000, scoped, tag = 'internal scratch']
  #allocation2 [shape = 'f32[1,128]{1,0:T(1,128)}', space=vmem, size = 0x200, scoped, tag = 'scratch operand']
  #allocation3 [shape = 'f32[1,128]{1,0:T(1,128)}', space=vmem, size = 0x200, scoped, tag = 'scratch operand']
  %s0 = inlined_call_operand.vmem [shape: bf16[36,72], index: 0, kind: input, shape index: {}]
  %s1 = inlined_call_operand.vmem [shape: f32[216,128], index: 1, kind: input, shape index: {}]
  %s2 = inlined_call_operand.vmem [shape: f32[128,128], index: 2, kind: input, shape index: {}]
  %s3 = inlined_call_operand.vmem [shape: f32[128,128], index: 3, kind: input, shape index: {}]
  %s4 = inlined_call_operand.vmem [shape: f32[1,128], index: 4, kind: input, shape index: {}]
  %s5 = inlined_call_operand.vmem [shape: f32[1,128], index: 5, kind: input, shape index: {}]
  %s6 = inlined_call_operand.vmem [shape: f32[32,128], index: 6, kind: output, shape index: {}]
  %s7 = sld [smem:[#allocation0]]
  $region69: #{single_conv_forward.1} parent=0
    _
  %s9 = ssub.s32 1, %s7
  %s10 = scalar_select 0, %s9, %s7
  loop: start=0, step=1, limit=4
  $region2: #{single_conv_forward.1} parent=0 // loop_pre_header
    _
  $region3: #{single_conv_forward.1} parent=0 // loop_header
    %s12 = sphi 0, %s16
    %p13 = scmp.ge.s32.totalorder %s12, 4
    %s26 = sphi 0, %s28
    %s29 = sphi 0, %s26
    %s30 = sphi 0, %s29
    %s46 = sphi 0, %s30
    %s50 = sphi 0, %s50
    %s52 = sphi 0, %s50
    %s53 = sphi 0, %s52
    %s67 = sphi 0, %s53
    %s71 = sphi 0, %s71
    %s73 = sphi 0, %s71
    %s74 = sphi 0, %s73
    %s88 = sphi 0, %s74
    %s92 = sphi 0, %s92
    %s94 = sphi 0, %s92
    %s95 = sphi 0, %s94
    %s109 = sphi 0, %s95
    %s113 = sphi 0, %s113
    %s115 = sphi 0, %s113
    %s116 = sphi 0, %s115
    %s130 = sphi 0, %s116
    %s134 = sphi 0, %s134
    %s136 = sphi 0, %s134
    %s137 = sphi 0, %s136
    %s151 = sphi 0, %s137
    %s155 = sphi 0, %s155
    %s157 = sphi 0, %s155
    %s158 = sphi 0, %s157
    %s172 = sphi 0, %s158
  $region4: #{single_conv_forward.1} parent=0 // loop_header_branch
    %15 = sbr.rel (%p13) target = $region8
  $region5: #{single_conv_forward.1} parent=0 // loop_body
    %s17 = ssub.s32 %s12, 1
    %s18 = ssub.s32 %s12, 2
    %s19 = sadd.s32 %s12, 1
    %p20 = scmp.lt.s32.totalorder %s12, 0
    %s21 = scalar_select %p20, %s12, 0
    %p22 = scmp.lt.s32.totalorder %s19, 0
    %s23 = scalar_select %p22, %s19, 0
    %s24 = ssub.s32 %s21, %s23
    %p25 = scmp.eq.s32.totalorder %s24, 0
    %s27 = sadd.s32 %s26, 1
    %s28 = scalar_select %p25, %s26, %s27
    %p31 = pneg %p25
    %p32 = scmp.eq.s32.totalorder %s12, 1
    %p33 = por %p31, %p32
    %p34 = scmp.ne.s32.totalorder %s26, %s29
    %p35 = scmp.eq.s32.totalorder %s12, 0
    %p36 = por %p34, %p35
    %p37 = scmp.ne.s32.totalorder %s26, %s29
    %p38 = scmp.eq.s32.totalorder %s17, 1
    %p39 = por %p37, %p38
    %p40 = scmp.ne.s32.totalorder %s29, %s30
    %p41 = scmp.eq.s32.totalorder %s17, 0
    %p42 = por %p40, %p41
    %p43 = scmp.ne.s32.totalorder %s29, %s30
    %p44 = scmp.eq.s32.totalorder %s18, 1
    %p45 = por %p43, %p44
    %p47 = scmp.ne.s32.totalorder %s30, %s46
    %p48 = scmp.eq.s32.totalorder %s18, 0
    %p49 = por %p47, %p48
    %s51 = sadd.s32 %s50, 1
    %p54 = scmp.eq.s32.totalorder %s12, 1
    %p55 = scmp.ne.s32.totalorder %s50, %s52
    %p56 = scmp.eq.s32.totalorder %s12, 0
    %p57 = por %p55, %p56
    %p58 = scmp.ne.s32.totalorder %s50, %s52
    %p59 = scmp.eq.s32.totalorder %s17, 1
    %p60 = por %p58, %p59
    %p61 = scmp.ne.s32.totalorder %s52, %s53
    %p62 = scmp.eq.s32.totalorder %s17, 0
    %p63 = por %p61, %p62
    %p64 = scmp.ne.s32.totalorder %s52, %s53
    %p65 = scmp.eq.s32.totalorder %s18, 1
    %p66 = por %p64, %p65
    %p68 = scmp.ne.s32.totalorder %s53, %s67
    %p69 = scmp.eq.s32.totalorder %s18, 0
    %p70 = por %p68, %p69
    %s72 = sadd.s32 %s71, 1
    %p75 = scmp.eq.s32.totalorder %s12, 1
    %p76 = scmp.ne.s32.totalorder %s71, %s73
    %p77 = scmp.eq.s32.totalorder %s12, 0
    %p78 = por %p76, %p77
    %p79 = scmp.ne.s32.totalorder %s71, %s73
    %p80 = scmp.eq.s32.totalorder %s17, 1
    %p81 = por %p79, %p80
    %p82 = scmp.ne.s32.totalorder %s73, %s74
    %p83 = scmp.eq.s32.totalorder %s17, 0
    %p84 = por %p82, %p83
    %p85 = scmp.ne.s32.totalorder %s73, %s74
    %p86 = scmp.eq.s32.totalorder %s18, 1
    %p87 = por %p85, %p86
    %p89 = scmp.ne.s32.totalorder %s74, %s88
    %p90 = scmp.eq.s32.totalorder %s18, 0
    %p91 = por %p89, %p90
    %s93 = sadd.s32 %s92, 1
    %p96 = scmp.eq.s32.totalorder %s12, 1
    %p97 = scmp.ne.s32.totalorder %s92, %s94
    %p98 = scmp.eq.s32.totalorder %s12, 0
    %p99 = por %p97, %p98
    %p100 = scmp.ne.s32.totalorder %s92, %s94
    %p101 = scmp.eq.s32.totalorder %s17, 1
    %p102 = por %p100, %p101
    %p103 = scmp.ne.s32.totalorder %s94, %s95
    %p104 = scmp.eq.s32.totalorder %s17, 0
    %p105 = por %p103, %p104
    %p106 = scmp.ne.s32.totalorder %s94, %s95
    %p107 = scmp.eq.s32.totalorder %s18, 1
    %p108 = por %p106, %p107
    %p110 = scmp.ne.s32.totalorder %s95, %s109
    %p111 = scmp.eq.s32.totalorder %s18, 0
    %p112 = por %p110, %p111
    %s114 = sadd.s32 %s113, 1
    %p117 = scmp.eq.s32.totalorder %s12, 1
    %p118 = scmp.ne.s32.totalorder %s113, %s115
    %p119 = scmp.eq.s32.totalorder %s12, 0
    %p120 = por %p118, %p119
    %p121 = scmp.ne.s32.totalorder %s113, %s115
    %p122 = scmp.eq.s32.totalorder %s17, 1
    %p123 = por %p121, %p122
    %p124 = scmp.ne.s32.totalorder %s115, %s116
    %p125 = scmp.eq.s32.totalorder %s17, 0
    %p126 = por %p124, %p125
    %p127 = scmp.ne.s32.totalorder %s115, %s116
    %p128 = scmp.eq.s32.totalorder %s18, 1
    %p129 = por %p127, %p128
    %p131 = scmp.ne.s32.totalorder %s116, %s130
    %p132 = scmp.eq.s32.totalorder %s18, 0
    %p133 = por %p131, %p132
    %s135 = sadd.s32 %s134, 1
    %p138 = scmp.eq.s32.totalorder %s12, 1
    %p139 = scmp.ne.s32.totalorder %s134, %s136
    %p140 = scmp.eq.s32.totalorder %s12, 0
    %p141 = por %p139, %p140
    %p142 = scmp.ne.s32.totalorder %s134, %s136
    %p143 = scmp.eq.s32.totalorder %s17, 1
    %p144 = por %p142, %p143
    %p145 = scmp.ne.s32.totalorder %s136, %s137
    %p146 = scmp.eq.s32.totalorder %s17, 0
    %p147 = por %p145, %p146
    %p148 = scmp.ne.s32.totalorder %s136, %s137
    %p149 = scmp.eq.s32.totalorder %s18, 1
    %p150 = por %p148, %p149
    %p152 = scmp.ne.s32.totalorder %s137, %s151
    %p153 = scmp.eq.s32.totalorder %s18, 0
    %p154 = por %p152, %p153
    %s156 = sadd.s32 %s155, 1
    %p159 = scmp.eq.s32.totalorder %s12, 1
    %p160 = scmp.ne.s32.totalorder %s155, %s157
    %p161 = scmp.eq.s32.totalorder %s12, 0
    %p162 = por %p160, %p161
    %p163 = scmp.ne.s32.totalorder %s155, %s157
    %p164 = scmp.eq.s32.totalorder %s17, 1
    %p165 = por %p163, %p164
    %p166 = scmp.ne.s32.totalorder %s157, %s158
    %p167 = scmp.eq.s32.totalorder %s17, 0
    %p168 = por %p166, %p167
    %p169 = scmp.ne.s32.totalorder %s157, %s158
    %p170 = scmp.eq.s32.totalorder %s18, 1
    %p171 = por %p169, %p170
    %p173 = scmp.ne.s32.totalorder %s158, %s172
    %p174 = scmp.eq.s32.totalorder %s18, 0
    %p175 = por %p173, %p174
    %p176 = scmp.le.s32.totalorder 1, %s12
    %p177 = scmp.lt.s32.totalorder %s12, 3
    %p178 = pnand %p176, %p177
    %p179 = pneg %p178
    // Predicated region
    $region9: #{single_conv_forward.1} parent=5 // pred_check
      _
    $region10: #{single_conv_forward.1} parent=5 // pred_check_branch
      %181 = sbr.rel (%p178) target = $region12
    $region11: #{single_conv_forward.1} parent=5 // pred_region
      %s182 = ssub.s32 %s12, 1
      // Predicated region
      $region13: #{single_conv_forward.1} parent=11 // pred_check
        %p183 = pneg %p63
      $region14: #{single_conv_forward.1} parent=11 // pred_check_branch
        %185 = sbr.rel (%p183) target = $region16
      $region15: #{single_conv_forward.1} parent=11 // pred_region
        _
      $region16: #{single_conv_forward.1} parent=11 // pred_fallthru
        _
      // Predicated region
      $region17: #{single_conv_forward.1} parent=11 // pred_check
        %p186 = pneg %p84
      $region18: #{single_conv_forward.1} parent=11 // pred_check_branch
        %188 = sbr.rel (%p186) target = $region20
      $region19: #{single_conv_forward.1} parent=11 // pred_region
        _
      $region20: #{single_conv_forward.1} parent=11 // pred_fallthru
        _
      // Predicated region
      $region21: #{single_conv_forward.1} parent=11 // pred_check
        %p189 = pneg %p105
      $region22: #{single_conv_forward.1} parent=11 // pred_check_branch
        %191 = sbr.rel (%p189) target = $region24
      $region23: #{single_conv_forward.1} parent=11 // pred_region
        _
      $region24: #{single_conv_forward.1} parent=11 // pred_fallthru
        _
      // Predicated region
      $region25: #{single_conv_forward.1} parent=11 // pred_check
        %p192 = pneg %p126
      $region26: #{single_conv_forward.1} parent=11 // pred_check_branch
        %194 = sbr.rel (%p192) target = $region28
      $region27: #{single_conv_forward.1} parent=11 // pred_region
        _
      $region28: #{single_conv_forward.1} parent=11 // pred_fallthru
        _
      // Predicated region
      $region29: #{single_conv_forward.1} parent=11 // pred_check
        %p195 = pneg %p147
      $region30: #{single_conv_forward.1} parent=11 // pred_check_branch
        %197 = sbr.rel (%p195) target = $region32
      $region31: #{single_conv_forward.1} parent=11 // pred_region
        _
      $region32: #{single_conv_forward.1} parent=11 // pred_fallthru
        _
    $region12: #{single_conv_forward.1} parent=5 // pred_fallthru
      _
    %p198 = scmp.lt.s32.totalorder %s12, 2
    // Predicated region
    $region33: #{single_conv_forward.1} parent=5 // pred_check
      %p199 = pneg %p198
    $region34: #{single_conv_forward.1} parent=5 // pred_check_branch
      %201 = sbr.rel (%p199) target = $region36
    $region35: #{single_conv_forward.1} parent=5 // pred_region
      // Predicated region
      $region37: #{single_conv_forward.1} parent=35 // pred_check
        %p202 = pneg %p36
      $region38: #{single_conv_forward.1} parent=35 // pred_check_branch
        %204 = sbr.rel (%p202) target = $region40
      $region39: #{single_conv_forward.1} parent=35 // pred_region
        %p205 = scmp.lt.s32.totalorder %s12, 0
        %s206 = scalar_select %p205, %s12, 0
        %s207 = smul.u32 5, %s206
        %p208 = scmp.lt.s32.totalorder %s207, 4
        %s209 = scalar_select %p208, %s207, 4
        %s210 = smul.addr %s209, 4
        %s211 = scalar_lea.vmem %s0, %s210
        %p212 = scmp.lt.s32.totalorder %s12, 0
        %s213 = scalar_select %p212, %s12, 0
        %s214 = smul.u32 5, %s213
      $region40: #{single_conv_forward.1} parent=35 // pred_fallthru
        _
    $region36: #{single_conv_forward.1} parent=5 // pred_fallthru
      _
    %p215 = scmp.le.s32.totalorder 1, %s12
    %p216 = scmp.lt.s32.totalorder %s12, 3
    %p217 = pnand %p215, %p216
    %p218 = pneg %p217
    // Predicated region
    $region41: #{single_conv_forward.1} parent=5 // pred_check
      _
    $region42: #{single_conv_forward.1} parent=5 // pred_check_branch
      %220 = sbr.rel (%p217) target = $region44
    $region43: #{single_conv_forward.1} parent=5 // pred_region
      %s221 = ssub.s32 %s12, 1
      %p222 = scmp.lt.s32.totalorder %s17, 0
      %s223 = scalar_select %p222, %s17, 0
      %s224 = smul.u32 5, %s223
      %p225 = scmp.lt.s32.totalorder %s224, 4
      %s226 = scalar_select %p225, %s224, 4
      %s227 = smul.addr %s226, 4
      %s228 = scalar_lea.vmem %s0, %s227
      %p229 = pneg %p42
      %p230 = pneg %p39
      %p231 = pneg %p63
      %p232 = pneg %p60
      %p233 = pneg %p84
      %p234 = pneg %p81
      %p235 = pneg %p105
      %p236 = pneg %p102
      %p237 = pneg %p126
      %p238 = pneg %p123
      %p239 = pneg %p147
      %p240 = pneg %p144
      %p241 = pneg %p168
      %p242 = pneg %p165
      %p243 = scmp.lt.s32.totalorder %s17, 0
      %s244 = scalar_select %p243, %s17, 0
      %s245 = smul.u32 5, %s244
      %p246 = scmp.lt.s32.totalorder %s245, 4
      %s247 = scalar_select %p246, %s245, 4
      %s248 = smul.addr %s247, 4
      %s249 = scalar_lea.vmem %s0, %s248
      %p250 = scmp.lt.s32.totalorder %s17, 0
      %s251 = scalar_select %p250, %s17, 0
      %s252 = smul.u32 5, %s251
      %p253 = scmp.eq.s32.totalorder %s17, 0
      // Predicated region
      $region45: #{single_conv_forward.1} parent=43 // pred_check
        %p254 = pneg %p253
      $region46: #{single_conv_forward.1} parent=43 // pred_check_branch
        %256 = sbr.rel (%p254) target = $region48
      $region47: #{single_conv_forward.1} parent=43 // pred_region
        %257 = vst [vmem:[#allocation2] sm:$0x1] 0.0
        %258 = vst [vmem:[#allocation3] sm:$0x1] 0.0
      $region48: #{single_conv_forward.1} parent=43 // pred_fallthru
        _
      %p259 = scmp.lt.s32.totalorder %s17, 1
      // Predicated region
      $region49: #{single_conv_forward.1} parent=43 // pred_check
        %p260 = pneg %p259
      $region50: #{single_conv_forward.1} parent=43 // pred_check_branch
        %262 = sbr.rel (%p260) target = $region52
      $region51: #{single_conv_forward.1} parent=43 // pred_region
        %s263 = smul.u32 %s17, 32
        %v264 = vld [vmem:[%s249] sm:$0xf]
        %v265 = vld [vmem:[%s249 + $0x4] sm:$0xf]
        %v266 = vld [vmem:[%s249 + $0x8] sm:$0x1]
        %v267 = vunpack.c.l.bf16 %v264
        %v268 = vunpack.c.l.bf16 %v265
        %v269 = vunpack.c.l.bf16 %v266
        %v270 = vld [vmem:[%s1] sm:$0xff]
        %v271 = vld [vmem:[%s1 + $0x8] sm:$0xff]
        %v272 = vld [vmem:[%s1 + $0x10] sm:$0xff]
        %v273 = vld [vmem:[%s1 + $0x18] sm:$0xff]
        %v274 = vld [vmem:[%s1 + $0x20] sm:$0xff]
        %v275 = vld [vmem:[%s1 + $0x28] sm:$0xff]
        %v276 = vld [vmem:[%s1 + $0x30] sm:$0xff]
        %v277 = vld [vmem:[%s1 + $0x38] sm:$0xff]
        %v278 = vld [vmem:[%s1 + $0x40] sm:$0xff]
        %v279 = vld [vmem:[%s1 + $0x48] sm:$0xff]
        %v280 = vld [vmem:[%s1 + $0x50] sm:$0xff]
        %v281 = vld [vmem:[%s1 + $0x58] sm:$0xff]
        %v282 = vld [vmem:[%s1 + $0x60] sm:$0xff]
        %v283 = vld [vmem:[%s1 + $0x68] sm:$0xff]
        %v284 = vld [vmem:[%s1 + $0x70] sm:$0xff]
        %v285 = vld [vmem:[%s1 + $0x78] sm:$0xff]
        %v286 = vld [vmem:[%s1 + $0x80] sm:$0xff]
        %v287 = vld [vmem:[%s1 + $0x88] sm:$0xff]
        %vm291 = vcmask 1046528
        %v292 = vrot.slane %v267, 1
        %v293 = vrot.slane %v268, 1
        %v294 = vsel %vm291, %v292, %v293
        %v295 = vrot.slane %v269, 1
        %v296 = vsel %vm291, %v293, %v295
        %vm297 = vcmask 588800
        %v298 = vsel %vm297, %v294, 0
        %v300 = vsel %vm297, %v296, 0
        %302 = vmatpush.msra.mxu0 0.0
        %303 = vmatpush.msra.mxu0 0.0
        %304 = vmatpush.msra.mxu0 0.0
        %305 = vmatpush.msra.mxu0 0.0
        %306 = vmatpush.msra.mxu0 0.0
        %307 = vmatpush.msra.mxu0 0.0
        %308 = vmatpush.msra.mxu0 0.0
        %309 = vmatpush.msra.mxu0 %v287
        %310 = vmatpush.msra.mxu0 %v286
        %311 = vmatpush.msra.mxu0 %v285
        %312 = vmatpush.msra.mxu0 %v284
        %313 = vmatpush.msra.mxu0 %v283
        %314 = vmatpush.msra.mxu0 %v282
        %315 = vmatpush.msra.mxu0 %v281
        %316 = vmatpush.msra.mxu0 %v280
        %317 = vmatpush.msra.mxu0 %v279
        %318 = vmatmul.f32.gmra.mxu0 %v298
        %v319 = vpop.f32.mrf.mxu0
        %v320 = vadd.f32 0.0, %v319
        %321 = vmatmul.f32.gmra.mxu0 %v300
        %v322 = vpop.f32.mrf.mxu0
        %v323 = vadd.f32 0.0, %v322
        %324 = vdwg.mxu0
        %v325 = vsel %vm297, %v267, 0
        %v327 = vsel %vm297, %v268, 0
        %329 = vmatpush.msra.mxu0 0.0
        %330 = vmatpush.msra.mxu0 0.0
        %331 = vmatpush.msra.mxu0 0.0
        %332 = vmatpush.msra.mxu0 0.0
        %333 = vmatpush.msra.mxu0 0.0
        %334 = vmatpush.msra.mxu0 0.0
        %335 = vmatpush.msra.mxu0 0.0
        %336 = vmatpush.msra.mxu0 %v278
        %337 = vmatpush.msra.mxu0 %v277
        %338 = vmatpush.msra.mxu0 %v276
        %339 = vmatpush.msra.mxu0 %v275
        %340 = vmatpush.msra.mxu0 %v274
        %341 = vmatpush.msra.mxu0 %v273
        %342 = vmatpush.msra.mxu0 %v272
        %343 = vmatpush.msra.mxu0 %v271
        %344 = vmatpush.msra.mxu0 %v270
        %345 = vmatmul.f32.gmra.mxu0 %v325
        %v346 = vpop.f32.mrf.mxu0
        %v347 = vadd.f32 %v320, %v346
        %348 = vmatmul.f32.gmra.mxu0 %v327
        %v349 = vpop.f32.mrf.mxu0
        %v350 = vadd.f32 %v323, %v349
        %351 = vdwg.mxu0
        %v352 = vld [vmem:[%s1 + $0x90] sm:$0xff]
        %v353 = vld [vmem:[%s1 + $0x98] sm:$0xff]
        %v354 = vld [vmem:[%s1 + $0xa0] sm:$0xff]
        %v355 = vld [vmem:[%s1 + $0xa8] sm:$0xff]
        %v356 = vld [vmem:[%s1 + $0xb0] sm:$0xff]
        %v357 = vld [vmem:[%s1 + $0xb8] sm:$0xff]
        %v358 = vld [vmem:[%s1 + $0xc0] sm:$0xff]
        %v359 = vld [vmem:[%s1 + $0xc8] sm:$0xff]
        %v360 = vld [vmem:[%s1 + $0xd0] sm:$0xff]
        %vm361 = vcmask 1045504
        %v362 = vrot.slane %v267, 2
        %v363 = vrot.slane %v268, 2
        %v364 = vsel %vm361, %v362, %v363
        %v365 = vrot.slane %v269, 2
        %v366 = vsel %vm361, %v363, %v365
        %v367 = vsel %vm297, %v364, 0
        %v369 = vsel %vm297, %v366, 0
        %371 = vmatpush.msra.mxu0 0.0
        %372 = vmatpush.msra.mxu0 0.0
        %373 = vmatpush.msra.mxu0 0.0
        %374 = vmatpush.msra.mxu0 0.0
        %375 = vmatpush.msra.mxu0 0.0
        %376 = vmatpush.msra.mxu0 0.0
        %377 = vmatpush.msra.mxu0 0.0
        %378 = vmatpush.msra.mxu0 %v360
        %379 = vmatpush.msra.mxu0 %v359
        %380 = vmatpush.msra.mxu0 %v358
        %381 = vmatpush.msra.mxu0 %v357
        %382 = vmatpush.msra.mxu0 %v356
        %383 = vmatpush.msra.mxu0 %v355
        %384 = vmatpush.msra.mxu0 %v354
        %385 = vmatpush.msra.mxu0 %v353
        %386 = vmatpush.msra.mxu0 %v352
        %387 = vmatmul.f32.gmra.mxu0 %v367
        %v388 = vpop.f32.mrf.mxu0
        %v389 = vadd.f32 0.0, %v388
        %390 = vmatmul.f32.gmra.mxu0 %v369
        %v391 = vpop.f32.mrf.mxu0
        %v392 = vadd.f32 0.0, %v391
        %393 = vdwg.mxu0
        %v394 = vadd.f32 %v347, %v389
        %v395 = vadd.f32 %v350, %v392
        %s396 = scalar_lea.vmem %s6, %s263
        %397 = vst [vmem:[%s396] sm:$0xff] %v394
        %398 = vst [vmem:[%s396 + $0x8] sm:$0xff] %v395
        %v399 = vld [vmem:[#allocation2] sm:$0x1]
        %v400 = vadd.f32 %v394, %v395
        %v401 = vrot.slane %v400, 4
        %v402 = vadd.f32 %v400, %v401
        %v403 = vrot.slane %v402, 2
        %v404 = vadd.f32 %v402, %v403
        %v405 = vrot.slane %v404, 1
        %v406 = vadd.f32 %v404, %v405
        %v407 = vadd.f32 %v399, %v406
        %408 = vst [vmem:[#allocation2] sm:$0x1] %v407
        %v409 = vld [vmem:[#allocation3] sm:$0x1]
        %v410 = vmul.f32 %v394, %v394
        %v411 = vmul.f32 %v395, %v395
        %v412 = vadd.f32 %v410, %v411
        %v413 = vrot.slane %v412, 4
        %v414 = vadd.f32 %v412, %v413
        %v415 = vrot.slane %v414, 2
        %v416 = vadd.f32 %v414, %v415
        %v417 = vrot.slane %v416, 1
        %v418 = vadd.f32 %v416, %v417
        %v419 = vadd.f32 %v409, %v418
        %420 = vst [vmem:[#allocation3] sm:$0x1] %v419
        %v421 = vld [vmem:[%s249 + $0x8] sm:$0xe]
        %v422 = vld [vmem:[%s249 + $0xc] sm:$0xf]
        %v423 = vld [vmem:[%s249 + $0x10] sm:$0x3]
        %v424 = vunpack.c.l.bf16 %v421
        %v425 = vunpack.c.l.bf16 %v422
        %v426 = vunpack.c.l.bf16 %v423
        %v427 = vld [vmem:[%s1] sm:$0xff]
        %v428 = vld [vmem:[%s1 + $0x8] sm:$0xff]
        %v429 = vld [vmem:[%s1 + $0x10] sm:$0xff]
        %v430 = vld [vmem:[%s1 + $0x18] sm:$0xff]
        %v431 = vld [vmem:[%s1 + $0x20] sm:$0xff]
        %v432 = vld [vmem:[%s1 + $0x28] sm:$0xff]
        %v433 = vld [vmem:[%s1 + $0x30] sm:$0xff]
        %v434 = vld [vmem:[%s1 + $0x38] sm:$0xff]
        %v435 = vld [vmem:[%s1 + $0x40] sm:$0xff]
        %v436 = vld [vmem:[%s1 + $0x48] sm:$0xff]
        %v437 = vld [vmem:[%s1 + $0x50] sm:$0xff]
        %v438 = vld [vmem:[%s1 + $0x58] sm:$0xff]
        %v439 = vld [vmem:[%s1 + $0x60] sm:$0xff]
        %v440 = vld [vmem:[%s1 + $0x68] sm:$0xff]
        %v441 = vld [vmem:[%s1 + $0x70] sm:$0xff]
        %v442 = vld [vmem:[%s1 + $0x78] sm:$0xff]
        %v443 = vld [vmem:[%s1 + $0x80] sm:$0xff]
        %v444 = vld [vmem:[%s1 + $0x88] sm:$0xff]
        %vm448 = vcmask 1044480
        %v449 = vrot.slane %v424, 3
        %v450 = vrot.slane %v425, 3
        %v451 = vsel %vm448, %v449, %v450
        %v452 = vrot.slane %v426, 3
        %v453 = vsel %vm448, %v450, %v452
        %v454 = vsel %vm297, %v451, 0
        %v456 = vsel %vm297, %v453, 0
        %458 = vmatpush.msra.mxu0 0.0
        %459 = vmatpush.msra.mxu0 0.0
        %460 = vmatpush.msra.mxu0 0.0
        %461 = vmatpush.msra.mxu0 0.0
        %462 = vmatpush.msra.mxu0 0.0
        %463 = vmatpush.msra.mxu0 0.0
        %464 = vmatpush.msra.mxu0 0.0
        %465 = vmatpush.msra.mxu0 %v444
        %466 = vmatpush.msra.mxu0 %v443
        %467 = vmatpush.msra.mxu0 %v442
        %468 = vmatpush.msra.mxu0 %v441
        %469 = vmatpush.msra.mxu0 %v440
        %470 = vmatpush.msra.mxu0 %v439
        %471 = vmatpush.msra.mxu0 %v438
        %472 = vmatpush.msra.mxu0 %v437
        %473 = vmatpush.msra.mxu0 %v436
        %474 = vmatmul.f32.gmra.mxu0 %v454
        %v475 = vpop.f32.mrf.mxu0
        %v476 = vadd.f32 0.0, %v475
        %477 = vmatmul.f32.gmra.mxu0 %v456
        %v478 = vpop.f32.mrf.mxu0
        %v479 = vadd.f32 0.0, %v478
        %480 = vdwg.mxu0
        %v481 = vrot.slane %v424, 2
        %v482 = vrot.slane %v425, 2
        %v483 = vsel %vm361, %v481, %v482
        %v484 = vrot.slane %v426, 2
        %v485 = vsel %vm361, %v482, %v484
        %v486 = vsel %vm297, %v483, 0
        %v488 = vsel %vm297, %v485, 0
        %490 = vmatpush.msra.mxu0 0.0
        %491 = vmatpush.msra.mxu0 0.0
        %492 = vmatpush.msra.mxu0 0.0
        %493 = vmatpush.msra.mxu0 0.0
        %494 = vmatpush.msra.mxu0 0.0
        %495 = vmatpush.msra.mxu0 0.0
        %496 = vmatpush.msra.mxu0 0.0
        %497 = vmatpush.msra.mxu0 %v435
        %498 = vmatpush.msra.mxu0 %v434
        %499 = vmatpush.msra.mxu0 %v433
        %500 = vmatpush.msra.mxu0 %v432
        %501 = vmatpush.msra.mxu0 %v431
        %502 = vmatpush.msra.mxu0 %v430
        %503 = vmatpush.msra.mxu0 %v429
        %504 = vmatpush.msra.mxu0 %v428
        %505 = vmatpush.msra.mxu0 %v427
        %506 = vmatmul.f32.gmra.mxu0 %v486
        %v507 = vpop.f32.mrf.mxu0
        %v508 = vadd.f32 %v476, %v507
        %509 = vmatmul.f32.gmra.mxu0 %v488
        %v510 = vpop.f32.mrf.mxu0
        %v511 = vadd.f32 %v479, %v510
        %512 = vdwg.mxu0
        %v513 = vld [vmem:[%s1 + $0x90] sm:$0xff]
        %v514 = vld [vmem:[%s1 + $0x98] sm:$0xff]
        %v515 = vld [vmem:[%s1 + $0xa0] sm:$0xff]
        %v516 = vld [vmem:[%s1 + $0xa8] sm:$0xff]
        %v517 = vld [vmem:[%s1 + $0xb0] sm:$0xff]
        %v518 = vld [vmem:[%s1 + $0xb8] sm:$0xff]
        %v519 = vld [vmem:[%s1 + $0xc0] sm:$0xff]
        %v520 = vld [vmem:[%s1 + $0xc8] sm:$0xff]
        %v521 = vld [vmem:[%s1 + $0xd0] sm:$0xff]
        %vm522 = vcmask 1043456
        %v523 = vrot.slane %v424, 4
        %v524 = vrot.slane %v425, 4
        %v525 = vsel %vm522, %v523, %v524
        %v526 = vrot.slane %v426, 4
        %v527 = vsel %vm522, %v524, %v526
        %v528 = vsel %vm297, %v525, 0
        %v530 = vsel %vm297, %v527, 0
        %532 = vmatpush.msra.mxu0 0.0
        %533 = vmatpush.msra.mxu0 0.0
        %534 = vmatpush.msra.mxu0 0.0
        %535 = vmatpush.msra.mxu0 0.0
        %536 = vmatpush.msra.mxu0 0.0
        %537 = vmatpush.msra.mxu0 0.0
        %538 = vmatpush.msra.mxu0 0.0
        %539 = vmatpush.msra.mxu0 %v521
        %540 = vmatpush.msra.mxu0 %v520
        %541 = vmatpush.msra.mxu0 %v519
        %542 = vmatpush.msra.mxu0 %v518
        %543 = vmatpush.msra.mxu0 %v517
        %544 = vmatpush.msra.mxu0 %v516
        %545 = vmatpush.msra.mxu0 %v515
        %546 = vmatpush.msra.mxu0 %v514
        %547 = vmatpush.msra.mxu0 %v513
        %548 = vmatmul.f32.gmra.mxu0 %v528
        %v549 = vpop.f32.mrf.mxu0
        %v550 = vadd.f32 0.0, %v549
        %551 = vmatmul.f32.gmra.mxu0 %v530
        %v552 = vpop.f32.mrf.mxu0
        %v553 = vadd.f32 0.0, %v552
        %554 = vdwg.mxu0
        %v555 = vadd.f32 %v508, %v550
        %v556 = vadd.f32 %v511, %v553
        %s557 = sadd.s32 %s263, 16
        %s558 = scalar_lea.vmem %s6, %s557
        %559 = vst [vmem:[%s558] sm:$0xff] %v555
        %560 = vst [vmem:[%s558 + $0x8] sm:$0xff] %v556
        %v561 = vld [vmem:[#allocation2] sm:$0x1]
        %v562 = vadd.f32 %v555, %v556
        %v563 = vrot.slane %v562, 4
        %v564 = vadd.f32 %v562, %v563
        %v565 = vrot.slane %v564, 2
        %v566 = vadd.f32 %v564, %v565
        %v567 = vrot.slane %v566, 1
        %v568 = vadd.f32 %v566, %v567
        %v569 = vadd.f32 %v561, %v568
        %570 = vst [vmem:[#allocation2] sm:$0x1] %v569
        %v571 = vld [vmem:[#allocation3] sm:$0x1]
        %v572 = vmul.f32 %v555, %v555
        %v573 = vmul.f32 %v556, %v556
        %v574 = vadd.f32 %v572, %v573
        %v575 = vrot.slane %v574, 4
        %v576 = vadd.f32 %v574, %v575
        %v577 = vrot.slane %v576, 2
        %v578 = vadd.f32 %v576, %v577
        %v579 = vrot.slane %v578, 1
        %v580 = vadd.f32 %v578, %v579
        %v581 = vadd.f32 %v571, %v580
        %582 = vst [vmem:[#allocation3] sm:$0x1] %v581
      $region52: #{single_conv_forward.1} parent=43 // pred_fallthru
        _
      %p583 = scmp.eq.s32.totalorder %s17, 1
      // Predicated region
      $region53: #{single_conv_forward.1} parent=43 // pred_check
        %p584 = pneg %p583
      $region54: #{single_conv_forward.1} parent=43 // pred_check_branch
        %586 = sbr.rel (%p584) target = $region56
      $region55: #{single_conv_forward.1} parent=43 // pred_region
        %v587 = vld [vmem:[#allocation2] sm:$0x1]
        %v588 = vld [vmem:[%s2] sm:$0xff]
        %v589 = vld [vmem:[%s2 + $0x8] sm:$0xff]
        %v590 = vld [vmem:[%s2 + $0x10] sm:$0xff]
        %v591 = vld [vmem:[%s2 + $0x18] sm:$0xff]
        %v592 = vld [vmem:[%s2 + $0x20] sm:$0xff]
        %v593 = vld [vmem:[%s2 + $0x28] sm:$0xff]
        %v594 = vld [vmem:[%s2 + $0x30] sm:$0xff]
        %v595 = vld [vmem:[%s2 + $0x38] sm:$0xff]
        %v596 = vld [vmem:[%s2 + $0x40] sm:$0xff]
        %v597 = vld [vmem:[%s2 + $0x48] sm:$0xff]
        %v598 = vld [vmem:[%s2 + $0x50] sm:$0xff]
        %v599 = vld [vmem:[%s2 + $0x58] sm:$0xff]
        %v600 = vld [vmem:[%s2 + $0x60] sm:$0xff]
        %v601 = vld [vmem:[%s2 + $0x68] sm:$0xff]
        %v602 = vld [vmem:[%s2 + $0x70] sm:$0xff]
        %v603 = vld [vmem:[%s2 + $0x78] sm:$0xff]
        %604 = vmatpush.msra.mxu0 %v603
        %605 = vmatpush.msra.mxu0 %v602
        %606 = vmatpush.msra.mxu0 %v601
        %607 = vmatpush.msra.mxu0 %v600
        %608 = vmatpush.msra.mxu0 %v599
        %609 = vmatpush.msra.mxu0 %v598
        %610 = vmatpush.msra.mxu0 %v597
        %611 = vmatpush.msra.mxu0 %v596
        %612 = vmatpush.msra.mxu0 %v595
        %613 = vmatpush.msra.mxu0 %v594
        %614 = vmatpush.msra.mxu0 %v593
        %615 = vmatpush.msra.mxu0 %v592
        %616 = vmatpush.msra.mxu0 %v591
        %617 = vmatpush.msra.mxu0 %v590
        %618 = vmatpush.msra.mxu0 %v589
        %619 = vmatpush.msra.mxu0 %v588
        %620 = vmatmul.f32.gmra.mxu0 %v587
        %v621 = vpop.f32.mrf.mxu0
        %v622 = vadd.f32 0.0, %v621
        %623 = vdwg.mxu0
        %v624 = vld [vmem:[#allocation3] sm:$0x1]
        %625 = vmatpush.msra.mxu0 %v603
        %626 = vmatpush.msra.mxu0 %v602
        %627 = vmatpush.msra.mxu0 %v601
        %628 = vmatpush.msra.mxu0 %v600
        %629 = vmatpush.msra.mxu0 %v599
        %630 = vmatpush.msra.mxu0 %v598
        %631 = vmatpush.msra.mxu0 %v597
        %632 = vmatpush.msra.mxu0 %v596
        %633 = vmatpush.msra.mxu0 %v595
        %634 = vmatpush.msra.mxu0 %v594
        %635 = vmatpush.msra.mxu0 %v593
        %636 = vmatpush.msra.mxu0 %v592
        %637 = vmatpush.msra.mxu0 %v591
        %638 = vmatpush.msra.mxu0 %v590
        %639 = vmatpush.msra.mxu0 %v589
        %640 = vmatpush.msra.mxu0 %v588
        %641 = vmatmul.f32.gmra.mxu0 %v624
        %v642 = vpop.f32.mrf.mxu0
        %v643 = vadd.f32 0.0, %v642
        %644 = vdwg.mxu0
        %v645 = vmul.f32 %v622, 0.001953125
        %v646 = vmul.f32 %v643, 0.001953125
        %v647 = vmul.f32 %v645, %v645
        %v648 = vsub.f32 %v646, %v647
        %v649 = vmax.f32 %v648, 0.0
        %v650 = vadd.f32 %v649, 1e-05
        %v651 = vrsqrt.pop %v650
        %v652 = vmul.f32 %v651, %v650
        %v653 = vmul.f32 %v652, %v651
        %v654 = vmul.f32 0.5, %v653
        %v655 = vsub.f32 1.5, %v654
        %v656 = vmul.f32 %v651, %v655
        %vm657 = vweird.f32 %v650
        %vm658 = vweird.f32 %v651
        %vm659 = vmor %vm657, %vm658
        %v660 = vsel %vm659, %v651, %v656
        %v661 = vld [vmem:[%s3] sm:$0xff]
        %v662 = vld [vmem:[%s3 + $0x8] sm:$0xff]
        %v663 = vld [vmem:[%s3 + $0x10] sm:$0xff]
        %v664 = vld [vmem:[%s3 + $0x18] sm:$0xff]
        %v665 = vld [vmem:[%s3 + $0x20] sm:$0xff]
        %v666 = vld [vmem:[%s3 + $0x28] sm:$0xff]
        %v667 = vld [vmem:[%s3 + $0x30] sm:$0xff]
        %v668 = vld [vmem:[%s3 + $0x38] sm:$0xff]
        %v669 = vld [vmem:[%s3 + $0x40] sm:$0xff]
        %v670 = vld [vmem:[%s3 + $0x48] sm:$0xff]
        %v671 = vld [vmem:[%s3 + $0x50] sm:$0xff]
        %v672 = vld [vmem:[%s3 + $0x58] sm:$0xff]
        %v673 = vld [vmem:[%s3 + $0x60] sm:$0xff]
        %v674 = vld [vmem:[%s3 + $0x68] sm:$0xff]
        %v675 = vld [vmem:[%s3 + $0x70] sm:$0xff]
        %v676 = vld [vmem:[%s3 + $0x78] sm:$0xff]
        %677 = vmatpush.msra.mxu0 %v676
        %678 = vmatpush.msra.mxu0 %v675
        %679 = vmatpush.msra.mxu0 %v674
        %680 = vmatpush.msra.mxu0 %v673
        %681 = vmatpush.msra.mxu0 %v672
        %682 = vmatpush.msra.mxu0 %v671
        %683 = vmatpush.msra.mxu0 %v670
        %684 = vmatpush.msra.mxu0 %v669
        %685 = vmatpush.msra.mxu0 %v668
        %686 = vmatpush.msra.mxu0 %v667
        %687 = vmatpush.msra.mxu0 %v666
        %688 = vmatpush.msra.mxu0 %v665
        %689 = vmatpush.msra.mxu0 %v664
        %690 = vmatpush.msra.mxu0 %v663
        %691 = vmatpush.msra.mxu0 %v662
        %692 = vmatpush.msra.mxu0 %v661
        %693 = vmatmul.f32.gmra.mxu0 %v645
        %v694 = vpop.f32.mrf.mxu0
        %v695 = vadd.f32 0.0, %v694
        %696 = vdwg.mxu0
        %697 = vmatpush.msra.mxu0 %v676
        %698 = vmatpush.msra.mxu0 %v675
        %699 = vmatpush.msra.mxu0 %v674
        %700 = vmatpush.msra.mxu0 %v673
        %701 = vmatpush.msra.mxu0 %v672
        %702 = vmatpush.msra.mxu0 %v671
        %703 = vmatpush.msra.mxu0 %v670
        %704 = vmatpush.msra.mxu0 %v669
        %705 = vmatpush.msra.mxu0 %v668
        %706 = vmatpush.msra.mxu0 %v667
        %707 = vmatpush.msra.mxu0 %v666
        %708 = vmatpush.msra.mxu0 %v665
        %709 = vmatpush.msra.mxu0 %v664
        %710 = vmatpush.msra.mxu0 %v663
        %711 = vmatpush.msra.mxu0 %v662
        %712 = vmatpush.msra.mxu0 %v661
        %713 = vmatmul.f32.gmra.mxu0 %v660
        %v714 = vpop.f32.mrf.mxu0
        %v715 = vadd.f32 0.0, %v714
        %716 = vdwg.mxu0
        %v717 = vld [vmem:[%s4] sm:$0x1]
        %v718 = vmul.f32 %v717, %v715
        %v719 = vld [vmem:[%s5] sm:$0x1]
        %v720 = vmul.f32 %v695, %v718
        %v721 = vsub.f32 %v719, %v720
        %v722 = vld [vmem:[%s6] sm:$0xff]
        %v723 = vld [vmem:[%s6 + $0x8] sm:$0xff]
        %v724 = vld [vmem:[%s6 + $0x10] sm:$0xff]
        %v725 = vld [vmem:[%s6 + $0x18] sm:$0xff]
        %v727 = vperm.slane %v718, 0
        %v729 = vmul.f32 %v722, %v727
        %v730 = vmul.f32 %v723, %v727
        %v731 = vmul.f32 %v724, %v727
        %v732 = vmul.f32 %v725, %v727
        %v734 = vperm.slane %v721, 0
        %v736 = vadd.f32 %v729, %v734
        %v737 = vadd.f32 %v730, %v734
        %v738 = vadd.f32 %v731, %v734
        %v739 = vadd.f32 %v732, %v734
        %v740 = vmax.f32 %v736, 0.0
        %v741 = vmax.f32 %v737, 0.0
        %v742 = vmax.f32 %v738, 0.0
        %v743 = vmax.f32 %v739, 0.0
        %744 = vst [vmem:[%s6] sm:$0xff] %v740
        %745 = vst [vmem:[%s6 + $0x8] sm:$0xff] %v741
        %746 = vst [vmem:[%s6 + $0x10] sm:$0xff] %v742
        %747 = vst [vmem:[%s6 + $0x18] sm:$0xff] %v743
      $region56: #{single_conv_forward.1} parent=43 // pred_fallthru
        _
      // Predicated region
      $region57: #{single_conv_forward.1} parent=43 // pred_check
        %p748 = pneg %p165
      $region58: #{single_conv_forward.1} parent=43 // pred_check_branch
        %750 = sbr.rel (%p748) target = $region60
      $region59: #{single_conv_forward.1} parent=43 // pred_region
        _
      $region60: #{single_conv_forward.1} parent=43 // pred_fallthru
        _
      // Predicated region
      $region61: #{single_conv_forward.1} parent=43 // pred_check
        %p751 = pneg %p165
      $region62: #{single_conv_forward.1} parent=43 // pred_check_branch
        %753 = sbr.rel (%p751) target = $region64
      $region63: #{single_conv_forward.1} parent=43 // pred_region
        _
      $region64: #{single_conv_forward.1} parent=43 // pred_fallthru
        _
    $region44: #{single_conv_forward.1} parent=5 // pred_fallthru
      _
    %p754 = scmp.le.s32.totalorder 2, %s12
    // Predicated region
    $region65: #{single_conv_forward.1} parent=5 // pred_check
      %p755 = pneg %p754
    $region66: #{single_conv_forward.1} parent=5 // pred_check_branch
      %757 = sbr.rel (%p755) target = $region68
    $region67: #{single_conv_forward.1} parent=5 // pred_region
      %s758 = ssub.s32 %s12, 2
    $region68: #{single_conv_forward.1} parent=5 // pred_fallthru
      _
  $region6: #{single_conv_forward.1} parent=0 // loop_footer
    %s16 = sadd.s32 1, %s12
  $region7: #{single_conv_forward.1} parent=0 // loop_footer_branch
    %11 = sbr.rel target = $region3
  $region8: #{single_conv_forward.1} parent=0 // loop_exit
    _

</llo_original>
